<compile_context>
chip_gen: v6e
topology: v6e:2x2x1
jax: 0.10.0
libtpu: 0.0.40
codegen_flags: <defaults>
</compile_context>

<pallas_src>
import functools
import math

import jax
import jax.numpy as jnp
from jax.experimental import pallas as pl
from jax.experimental.pallas import tpu as pltpu


def _cdiv(a, b):
    return -(-a // b)


def _tpu_generation():
    """Best-effort TPU generation (5 / 6 / 7) from the device kind string."""
    try:
        kind = jax.devices()[0].device_kind.lower()
    except Exception:
        return None
    for gen in (7, 6, 5):
        if f"v{gen}" in kind:
            return gen
    return None


# Per-generation defaults: block element target, scoped-VMEM limit, and
# whether to attempt a genuine 2-TensorCore split of the reduction.
_GEN_DEFAULTS = {
    7: dict(block_elems=2 * 1024 * 1024, vmem_bytes=48 << 20, two_cores=True),
    6: dict(block_elems=4 * 1024 * 1024, vmem_bytes=96 << 20, two_cores=False),
    5: dict(block_elems=1 * 1024 * 1024, vmem_bytes=32 << 20, two_cores=False),
}
_DEFAULT_CFG = dict(block_elems=1 * 1024 * 1024, vmem_bytes=32 << 20,
                    two_cores=False)


def _dice_partial_kernel(x_ref, t_ref, out_ref, acc_i_ref, acc_s_ref, *,
                         rows_total, block_rows, blocks_per_core,
                         num_blocks, need_mask, chunk_rows):
    """Per-core partial sums for dice: lane0 = sum(x*t), lane1 = sum(x)+sum(t).

    x_ref / t_ref : (block_rows, width) VMEM tiles of the flattened inputs
    out_ref       : (1, 1, 128) per-core partial-sum row
    acc_*_ref     : (chunk_rows, width) f32 vreg-scale accumulators
    """
    c = pl.program_id(0)                 # TensorCore split (CORE_PARALLEL on v7x)
    k = pl.program_id(1)                 # reduction axis ("arbitrary")
    g = c * blocks_per_core + k          # logical (unclamped) block index
    nchunks = block_rows // chunk_rows

    @pl.when(k == 0)
    def _init():
        acc_i_ref[...] = jnp.zeros_like(acc_i_ref)
        acc_s_ref[...] = jnp.zeros_like(acc_s_ref)

    def chunk_update(off, xv, tv, acc_i, acc_s, masked):
        xv = xv.astype(jnp.float32)
        tv = tv.astype(jnp.float32)
        if masked:
            # Narrow (chunk_rows, 1) sublane iota vs. scalar threshold; the
            # lane dimension is handled by broadcasting.  Rows at/after
            # rows_total (ragged tail / clamped over-run blocks) are zeroed
            # before they enter any sum, so OOB garbage cannot propagate.
            r = (jax.lax.broadcasted_iota(jnp.int32, (chunk_rows, 1), 0)
                 + g * block_rows + off)
            valid = r < rows_total
            xv = jnp.where(valid, xv, 0.0)
            tv = jnp.where(valid, tv, 0.0)
        return acc_i + xv * tv, acc_s + (xv + tv)

    def run_block(masked):
        if nchunks == 1:
            acc_i, acc_s = chunk_update(0, x_ref[...], t_ref[...],
                                        acc_i_ref[...], acc_s_ref[...],
                                        masked)
        else:
            def body(i, carry):
                off = pl.multiple_of(i * chunk_rows, chunk_rows)
                xv = x_ref[pl.ds(off, chunk_rows), :]
                tv = t_ref[pl.ds(off, chunk_rows), :]
                return chunk_update(off, xv, tv, carry[0], carry[1], masked)

            acc_i, acc_s = jax.lax.fori_loop(
                0, nchunks, body, (acc_i_ref[...], acc_s_ref[...]),
                unroll=min(nchunks, 4))
        acc_i_ref[...] = acc_i
        acc_s_ref[...] = acc_s

    if need_mask:
        last = num_blocks - 1

        # Full blocks stream unmasked at the HBM roofline; only the single
        # ragged block (and clamped over-run blocks, whose logical rows all
        # fall past rows_total) pay for the mask.
        @pl.when(g < last)
        def _dense():
            run_block(masked=False)

        @pl.when(g >= last)
        def _ragged():
            run_block(masked=True)
    else:
        run_block(masked=False)

    @pl.when(k == pl.num_programs(1) - 1)
    def _finalize():
        inter = jnp.sum(acc_i_ref[...])
        total = jnp.sum(acc_s_ref[...])
        lane = jax.lax.broadcasted_iota(jnp.int32, out_ref.shape, 2)
        out_ref[...] = jnp.where(lane == 0, inter,
                                 jnp.where(lane == 1, total, 0.0))


def dice_loss(inputs, targets, smooth=1.0, target_block_elems=None):
    """Pallas implementation of DiceLoss.forward. Returns a scalar f32."""
    assert inputs.shape == targets.shape
    total = math.prod(inputs.shape)

    gen = _tpu_generation()
    cfg = _GEN_DEFAULTS.get(gen, _DEFAULT_CFG)
    if target_block_elems is None:
        target_block_elems = cfg["block_elems"]

    x = inputs.reshape(-1)
    t = targets.reshape(-1)

    # Tail handling: run the kernel on the largest multiple-of-128 prefix and
    # fold the (<128-element) remainder in with plain JAX instead of padding
    # (which would cost an extra full-tensor HBM pass).
    main = (total // 128) * 128
    if main != total:
        xt = x[main:].astype(jnp.float32)
        tt = t[main:].astype(jnp.float32)
        tail_inter = jnp.sum(xt * tt)
        tail_sums = jnp.sum(xt) + jnp.sum(tt)
        x, t, total = x[:main], t[:main], main
    else:
        tail_inter = jnp.float32(0.0)
        tail_sums = jnp.float32(0.0)

    if total == 0:
        intersection, sums = tail_inter, tail_sums
    else:
        # Widest lane-dense width (multiple of 128, capped at 512 to keep the
        # accumulators at a few vregs) that divides the element count.
        width = 128
        for cand in (512, 256):
            if total % cand == 0:
                width = cand
                break
        rows = total // width
        x2 = x.reshape(rows, width)
        t2 = t.reshape(rows, width)

        # MiB-scale row blocks (multiple of 16) unless the full extent fits.
        block_rows = max(16, (target_block_elems // width) // 16 * 16)
        if block_rows >= rows:
            block_rows = rows
        num_blocks = _cdiv(rows, block_rows)

        # Real 2-TensorCore split only on v7x; single-TC v5e/v6e keep one core.
        nsplit = 2 if (cfg["two_cores"] and num_blocks >= 2) else 1
        blocks_per_core = _cdiv(num_blocks, nsplit)
        need_mask = (nsplit * blocks_per_core * block_rows) != rows
        chunk_rows = 8 if block_rows % 8 == 0 else block_rows

        def in_map(c, k):
            g = c * blocks_per_core + k
            # Clamp over-run block indices onto the last valid block; the
            # in-kernel mask zeroes their contribution.
            return (jnp.minimum(g, num_blocks - 1), 0)

        kernel = functools.partial(
            _dice_partial_kernel,
            rows_total=rows,
            block_rows=block_rows,
            blocks_per_core=blocks_per_core,
            num_blocks=num_blocks,
            need_mask=need_mask,
            chunk_rows=chunk_rows,
        )

        if nsplit == 2:
            dim_sems = (getattr(pltpu, "CORE_PARALLEL", "parallel"),
                        "arbitrary")
        else:
            dim_sems = ("arbitrary", "arbitrary")

        partials = pl.pallas_call(
            kernel,
            out_shape=jax.ShapeDtypeStruct((nsplit, 1, 128), jnp.float32),
            grid_spec=pltpu.PrefetchScalarGridSpec(
                num_scalar_prefetch=0,
                grid=(nsplit, blocks_per_core),
                in_specs=[
                    pl.BlockSpec((block_rows, width), in_map),
                    pl.BlockSpec((block_rows, width), in_map),
                ],
                out_specs=pl.BlockSpec((1, 1, 128), lambda c, k: (c, 0, 0)),
                scratch_shapes=[
                    pltpu.VMEM((chunk_rows, width), jnp.float32),
                    pltpu.VMEM((chunk_rows, width), jnp.float32),
                ],
            ),
            compiler_params=pltpu.CompilerParams(
                dimension_semantics=dim_sems,
                vmem_limit_bytes=cfg["vmem_bytes"],
            ),
        )(x2, t2)

        intersection = jnp.sum(partials[:, 0, 0]) + tail_inter
        sums = jnp.sum(partials[:, 0, 1]) + tail_sums

    dice = (2.0 * intersection + smooth) / (sums + smooth)
    return (1.0 - dice).astype(jnp.float32)


def dice_loss_ref(inputs, targets, smooth=1.0):
    """Pure-JAX reference mirroring the PyTorch module."""
    x = inputs.reshape(inputs.shape[0], -1).astype(jnp.float32)
    t = targets.reshape(targets.shape[0], -1).astype(jnp.float32)
    intersection = jnp.sum(x * t)
    dice = (2.0 * intersection + smooth) / (jnp.sum(x) + jnp.sum(t) + smooth)
    return 1.0 - dice


if __name__ == "__main__":
    key = jax.random.PRNGKey(0)
    k1, k2, k3, k4 = jax.random.split(key, 4)

    # Test 1: f32 NCHW inputs (sigmoid probs + binary mask), like the module.
    shape1 = (2, 4, 16, 16)
    inp1 = jax.nn.sigmoid(jax.random.normal(k1, shape1, dtype=jnp.float32))
    tgt1 = (jax.random.uniform(k2, shape1) > 0.5).astype(jnp.float32)
    out1 = jax.block_until_ready(dice_loss(inp1, tgt1))
    ref1 = dice_loss_ref(inp1, tgt1)
    assert jnp.allclose(out1, ref1, atol=1e-5, rtol=1e-5), (out1, ref1)

    # Test 2: bf16 inputs, odd shape + tiny block target -> exercises the
    # multi-block grid, the chunked accumulator loop and the ragged-row
    # (mask-only-on-last-block) path.
    shape2 = (2, 5, 24, 24)
    inp2 = jax.nn.sigmoid(jax.random.normal(k3, shape2)).astype(jnp.bfloat16)
    tgt2 = (jax.random.uniform(k4, shape2) > 0.5).astype(jnp.bfloat16)
    out2 = jax.block_until_ready(dice_loss(inp2, tgt2, target_block_elems=2048))
    ref2 = dice_loss_ref(inp2, tgt2)
    assert jnp.allclose(out2, ref2, atol=1e-5, rtol=1e-5), (out2, ref2)

    print("KERNEL_OK")
</pallas_src>

<mosaic_0001>
module attributes {stable_mosaic.version = 11 : i64} {
  func.func @_dice_partial_kernel(%arg0: i32, %arg1: i32, %arg2: memref<4x512xf32, #tpu.memory_space<vmem>>, %arg3: memref<4x512xf32, #tpu.memory_space<vmem>>, %arg4: memref<1x1x128xf32, #tpu.memory_space<vmem>>, %arg5: memref<4x512xf32, #tpu.memory_space<vmem>>, %arg6: memref<4x512xf32, #tpu.memory_space<vmem>>) attributes {dimension_semantics = [#tpu.dimension_semantics<arbitrary>, #tpu.dimension_semantics<arbitrary>], iteration_bounds = array<i64: 1, 1>, scalar_prefetch = 0 : i64, scratch_operands = 2 : i64, tpu.core_type = #tpu.core_type<tc>, window_params = [{transform_indices = @transform_0, window_bounds = array<i64: 4, 512>}, {transform_indices = @transform_1, window_bounds = array<i64: 4, 512>}, {transform_indices = @transform_2, window_bounds = array<i64: 1, 1, 128>}]} {
    %c0_i32 = arith.constant 0 : i32
    %0 = arith.cmpi eq, %arg1, %c0_i32 : i32
    %1 = arith.extui %0 : i1 to i32
    %c0_i32_0 = arith.constant 0 : i32
    %2 = arith.cmpi ne, %1, %c0_i32_0 : i32
    scf.if %2 {
      %cst = arith.constant 0.000000e+00 : f32
      %16 = vector.broadcast %cst : f32 to vector<4x512xf32>
      %c0_14 = arith.constant 0 : index
      %c0_15 = arith.constant 0 : index
      %17 = vector.load %arg5[%c0_14, %c0_15] : memref<4x512xf32, #tpu.memory_space<vmem>>, vector<4x512xf32>
      tpu.vector_store %arg5[%c0_14, %c0_15], %16 {strides = array<i32>} : memref<4x512xf32, #tpu.memory_space<vmem>>, vector<4x512xf32>,
      %cst_16 = arith.constant 0.000000e+00 : f32
      %18 = vector.broadcast %cst_16 : f32 to vector<4x512xf32>
      %c0_17 = arith.constant 0 : index
      %c0_18 = arith.constant 0 : index
      %19 = vector.load %arg6[%c0_17, %c0_18] : memref<4x512xf32, #tpu.memory_space<vmem>>, vector<4x512xf32>
      tpu.vector_store %arg6[%c0_17, %c0_18], %18 {strides = array<i32>} : memref<4x512xf32, #tpu.memory_space<vmem>>, vector<4x512xf32>,
    } else {
    }
    %c0 = arith.constant 0 : index
    %c0_1 = arith.constant 0 : index
    %3 = vector.load %arg2[%c0, %c0_1] : memref<4x512xf32, #tpu.memory_space<vmem>>, vector<4x512xf32>
    %c0_2 = arith.constant 0 : index
    %c0_3 = arith.constant 0 : index
    %4 = vector.load %arg3[%c0_2, %c0_3] : memref<4x512xf32, #tpu.memory_space<vmem>>, vector<4x512xf32>
    %c0_4 = arith.constant 0 : index
    %c0_5 = arith.constant 0 : index
    %5 = vector.load %arg5[%c0_4, %c0_5] : memref<4x512xf32, #tpu.memory_space<vmem>>, vector<4x512xf32>
    %c0_6 = arith.constant 0 : index
    %c0_7 = arith.constant 0 : index
    %6 = vector.load %arg6[%c0_6, %c0_7] : memref<4x512xf32, #tpu.memory_space<vmem>>, vector<4x512xf32>
    %7 = arith.mulf %3, %4 : vector<4x512xf32>
    %8 = arith.addf %5, %7 : vector<4x512xf32>
    %9 = arith.addf %3, %4 : vector<4x512xf32>
    %10 = arith.addf %6, %9 : vector<4x512xf32>
    %c0_8 = arith.constant 0 : index
    %c0_9 = arith.constant 0 : index
    %11 = vector.load %arg5[%c0_8, %c0_9] : memref<4x512xf32, #tpu.memory_space<vmem>>, vector<4x512xf32>
    tpu.vector_store %arg5[%c0_8, %c0_9], %8 {strides = array<i32>} : memref<4x512xf32, #tpu.memory_space<vmem>>, vector<4x512xf32>,
    %c0_10 = arith.constant 0 : index
    %c0_11 = arith.constant 0 : index
    %12 = vector.load %arg6[%c0_10, %c0_11] : memref<4x512xf32, #tpu.memory_space<vmem>>, vector<4x512xf32>
    tpu.vector_store %arg6[%c0_10, %c0_11], %10 {strides = array<i32>} : memref<4x512xf32, #tpu.memory_space<vmem>>, vector<4x512xf32>,
    %c0_i32_12 = arith.constant 0 : i32
    %13 = arith.cmpi eq, %arg1, %c0_i32_12 : i32
    %14 = arith.extui %13 : i1 to i32
    %c0_i32_13 = arith.constant 0 : i32
    %15 = arith.cmpi ne, %14, %c0_i32_13 : i32
    scf.if %15 {
      %c0_14 = arith.constant 0 : index
      %c0_15 = arith.constant 0 : index
      %16 = vector.load %arg5[%c0_14, %c0_15] : memref<4x512xf32, #tpu.memory_space<vmem>>, vector<4x512xf32>
      %17 = vector.shape_cast %16 : vector<4x512xf32> to vector<1x4x512xf32>
      %cst = arith.constant dense<0.000000e+00> : vector<1xf32>
      %18 = vector.multi_reduction <add>, %17, %cst [1, 2] : vector<1x4x512xf32> to vector<1xf32>
      %19 = vector.shape_cast %18 : vector<1xf32> to vector<1x1x1xf32>
      %20 = vector.extract %19[0, 0, 0] : f32 from vector<1x1x1xf32>
      %c0_16 = arith.constant 0 : index
      %c0_17 = arith.constant 0 : index
      %21 = vector.load %arg6[%c0_16, %c0_17] : memref<4x512xf32, #tpu.memory_space<vmem>>, vector<4x512xf32>
      %22 = vector.shape_cast %21 : vector<4x512xf32> to vector<1x4x512xf32>
      %cst_18 = arith.constant dense<0.000000e+00> : vector<1xf32>
      %23 = vector.multi_reduction <add>, %22, %cst_18 [1, 2] : vector<1x4x512xf32> to vector<1xf32>
      %24 = vector.shape_cast %23 : vector<1xf32> to vector<1x1x1xf32>
      %25 = vector.extract %24[0, 0, 0] : f32 from vector<1x1x1xf32>
      %26 = tpu.iota {dimensions = array<i32: 2>} : vector<1x1x128xi32>
      %c0_i32_19 = arith.constant 0 : i32
      %27 = vector.broadcast %c0_i32_19 : i32 to vector<1x1x128xi32>
      %28 = arith.cmpi eq, %26, %27 : vector<1x1x128xi32>
      %c1_i32 = arith.constant 1 : i32
      %29 = vector.broadcast %c1_i32 : i32 to vector<1x1x128xi32>
      %30 = arith.cmpi eq, %26, %29 : vector<1x1x128xi32>
      %cst_20 = arith.constant 0.000000e+00 : f32
      %31 = vector.broadcast %25 : f32 to vector<1x1x128xf32>
      %32 = vector.broadcast %cst_20 : f32 to vector<1x1x128xf32>
      %33 = arith.select %30, %31, %32 : vector<1x1x128xi1>, vector<1x1x128xf32>
      %34 = vector.broadcast %20 : f32 to vector<1x1x128xf32>
      %35 = arith.select %28, %34, %33 : vector<1x1x128xi1>, vector<1x1x128xf32>
      %c0_21 = arith.constant 0 : index
      %c0_22 = arith.constant 0 : index
      %c0_23 = arith.constant 0 : index
      %36 = vector.load %arg4[%c0_21, %c0_22, %c0_23] : memref<1x1x128xf32, #tpu.memory_space<vmem>>, vector<1x1x128xf32>
      tpu.vector_store %arg4[%c0_21, %c0_22, %c0_23], %35 {strides = array<i32>} : memref<1x1x128xf32, #tpu.memory_space<vmem>>, vector<1x1x128xf32>,
    } else {
    }
    return
  }
  func.func @transform_0(%arg0: i32, %arg1: i32) -> (i32, i32) {
    %c1_i32 = arith.constant 1 : i32
    %0 = arith.muli %arg0, %c1_i32 : i32
    %1 = arith.addi %0, %arg1 : i32
    %c0_i32 = arith.constant 0 : i32
    %2 = arith.minsi %1, %c0_i32 : i32
    %c0_i32_0 = arith.constant 0 : i32
    %c0_i32_1 = arith.constant 0 : i32
    return %2, %c0_i32_0 : i32, i32
  }
  func.func @transform_1(%arg0: i32, %arg1: i32) -> (i32, i32) {
    %c1_i32 = arith.constant 1 : i32
    %0 = arith.muli %arg0, %c1_i32 : i32
    %1 = arith.addi %0, %arg1 : i32
    %c0_i32 = arith.constant 0 : i32
    %2 = arith.minsi %1, %c0_i32 : i32
    %c0_i32_0 = arith.constant 0 : i32
    %c0_i32_1 = arith.constant 0 : i32
    return %2, %c0_i32_0 : i32, i32
  }
  func.func @transform_2(%arg0: i32, %arg1: i32) -> (i32, i32, i32) {
    %c0_i32 = arith.constant 0 : i32
    %c0_i32_0 = arith.constant 0 : i32
    %c0_i32_1 = arith.constant 0 : i32
    return %arg0, %c0_i32, %c0_i32_0 : i32, i32, i32
  }
}

</mosaic_0001>

<llo_original>
// kernel: tpu_custom_call.1
$region0: #{tpu_custom_call.1}
  #allocation0 [shape = 'u32[]', space=smem, size = 0x4, offset = 0x4, fixed_abs, tag = 'smem constant byte address 0x4 - core index']
  #allocation1 [shape = 'u32[144,128]{1,0:T(1,128)}', space=vmem, size = 0x12000, scoped, tag = 'internal scratch']
  #allocation2 [shape = 'f32[4,512]{1,0:T(4,128)}', space=vmem, size = 0x2000, scoped, tag = 'scratch operand']
  #allocation3 [shape = 'f32[4,512]{1,0:T(4,128)}', space=vmem, size = 0x2000, scoped, tag = 'scratch operand']
  %s0 = inlined_call_operand.hbm [shape: f32[4,512], index: 0, kind: input, shape index: {}]
  %s1 = inlined_call_operand.hbm [shape: f32[4,512], index: 1, kind: input, shape index: {}]
  %s2 = inlined_call_operand.hbm [shape: f32[1,1,128], index: 2, kind: output, shape index: {}]
  %s3 = sld [smem:[#allocation0]]
  $region34: #{tpu_custom_call.1} parent=0
    _
  %s5 = ssub.s32 1, %s3
  %s6 = scalar_select 0, %s5, %s3
  $region1: #{tpu_custom_call.1} parent=0
    #allocation4 [shape = 'u8[8192]{0}', space=vmem, size = 0x2000, scoped, tag = 'input window, operand 0, single buffered']
    #allocation5 [shape = 's32[1]{0}', space=sflag, size = 0x4, scoped, tag = 'scoped memory for tpu_custom_call.1']
    #allocation6 [shape = 's32[1]{0}', space=sflag, size = 0x4, scoped, tag = 'scoped memory for tpu_custom_call.1']
    #allocation7 [shape = 'u8[8192]{0}', space=vmem, size = 0x2000, scoped, tag = 'input window, operand 1, single buffered']
    #allocation8 [shape = 's32[1]{0}', space=sflag, size = 0x4, scoped, tag = 'scoped memory for tpu_custom_call.1']
    #allocation9 [shape = 'u8[512]{0}', space=vmem, size = 0x400, scoped, tag = 'output window, operand 0, single buffered']
    %7 = vsyncpa [#allocation5], 0
    %8 = vsyncpa [#allocation8], 0
    %9 = vsyncpa [#allocation6], 0
    // Predicated region
    $region2: #{tpu_custom_call.1} parent=1 // pred_check
      _
    $region3: #{tpu_custom_call.1} parent=1 // pred_check_branch
      %11 = sbr.rel (0) target = $region5
    $region4: #{tpu_custom_call.1} parent=1 // pred_region
      %s12 = sadd.s32 0, 0
      %p13 = scmp.lt.s32.totalorder %s12, 0
      %s14 = scalar_select %p13, %s12, 0
      %s16 = ssub.s32 256, 256
      %17 = vsyncadd [#allocation5], %s16
      %s18 = smul.addr %s14, 4
      %s19 = smul.addr %s18, 64
      %s20 = scalar_lea.hbm %s0, %s19
      %s22 = sshll.u32 [#allocation4], 4
      %s23 = int_to_ptr.vmem [resolvable:$true] %s22
      %25 = dma.hbm_to_vmem [thread:$0]  %s20, 256, %s23, [#allocation5]
    $region5: #{tpu_custom_call.1} parent=1 // pred_fallthru
      _
    // Predicated region
    $region6: #{tpu_custom_call.1} parent=1 // pred_check
      _
    $region7: #{tpu_custom_call.1} parent=1 // pred_check_branch
      %27 = sbr.rel (0) target = $region9
    $region8: #{tpu_custom_call.1} parent=1 // pred_region
      %s28 = sadd.s32 0, 0
      %p29 = scmp.lt.s32.totalorder %s28, 0
      %s30 = scalar_select %p29, %s28, 0
      %s32 = ssub.s32 256, 256
      %33 = vsyncadd [#allocation8], %s32
      %s34 = smul.addr %s30, 4
      %s35 = smul.addr %s34, 64
      %s36 = scalar_lea.hbm %s1, %s35
      %s38 = sshll.u32 [#allocation7], 4
      %s39 = int_to_ptr.vmem [resolvable:$true] %s38
      %41 = dma.hbm_to_vmem [thread:$0]  %s36, 256, %s39, [#allocation8]
    $region9: #{tpu_custom_call.1} parent=1 // pred_fallthru
      _
    // Predicated region
    $region10: #{tpu_custom_call.1} parent=1 // pred_check
      _
    $region11: #{tpu_custom_call.1} parent=1 // pred_check_branch
      %43 = sbr.rel (0) target = $region13
    $region12: #{tpu_custom_call.1} parent=1 // pred_region
      %44 = dma.done [#allocation5], 256
    $region13: #{tpu_custom_call.1} parent=1 // pred_fallthru
      _
    // Predicated region
    $region14: #{tpu_custom_call.1} parent=1 // pred_check
      _
    $region15: #{tpu_custom_call.1} parent=1 // pred_check_branch
      %46 = sbr.rel (0) target = $region17
    $region16: #{tpu_custom_call.1} parent=1 // pred_region
      %47 = dma.done [#allocation8], 256
    $region17: #{tpu_custom_call.1} parent=1 // pred_fallthru
      _
    %s48 = sadd.s32 0, 0
    %p49 = scmp.lt.s32.totalorder %s48, 0
    %s50 = scalar_select %p49, %s48, 0
    %s51 = sadd.s32 0, 0
    %p52 = scmp.lt.s32.totalorder %s51, 0
    %s53 = scalar_select %p52, %s51, 0
    %p54 = scmp.eq.s32.totalorder 0, 0
    // Predicated region
    $region18: #{tpu_custom_call.1} parent=1 // pred_check
      %p55 = pneg %p54
    $region19: #{tpu_custom_call.1} parent=1 // pred_check_branch
      %57 = sbr.rel (%p55) target = $region21
    $region20: #{tpu_custom_call.1} parent=1 // pred_region
      %58 = vst [vmem:[#allocation2] sm:$0xff] 0.0
      %59 = vst [vmem:[#allocation2 + $0x8] sm:$0xff] 0.0
      %60 = vst [vmem:[#allocation3] sm:$0xff] 0.0
      %61 = vst [vmem:[#allocation3 + $0x8] sm:$0xff] 0.0
    $region21: #{tpu_custom_call.1} parent=1 // pred_fallthru
      _
    %v62 = vld [vmem:[#allocation4] sm:$0xff]
    %v63 = vld [vmem:[#allocation4 + $0x8] sm:$0xff]
    %v64 = vld [vmem:[#allocation7] sm:$0xff]
    %v65 = vld [vmem:[#allocation7 + $0x8] sm:$0xff]
    %v66 = vld [vmem:[#allocation2] sm:$0xff]
    %v67 = vld [vmem:[#allocation2 + $0x8] sm:$0xff]
    %v68 = vld [vmem:[#allocation3] sm:$0xff]
    %v69 = vld [vmem:[#allocation3 + $0x8] sm:$0xff]
    %v70 = vmul.f32 %v62, %v64
    %v71 = vmul.f32 %v63, %v65
    %v72 = vadd.f32 %v66, %v70
    %v73 = vadd.f32 %v67, %v71
    %v74 = vadd.f32 %v62, %v64
    %v75 = vadd.f32 %v63, %v65
    %v76 = vadd.f32 %v68, %v74
    %v77 = vadd.f32 %v69, %v75
    %78 = vst [vmem:[#allocation2] sm:$0xff] %v72
    %79 = vst [vmem:[#allocation2 + $0x8] sm:$0xff] %v73
    %80 = vst [vmem:[#allocation3] sm:$0xff] %v76
    %81 = vst [vmem:[#allocation3 + $0x8] sm:$0xff] %v77
    // Predicated region
    $region22: #{tpu_custom_call.1} parent=1 // pred_check
      %p82 = pneg %p54
    $region23: #{tpu_custom_call.1} parent=1 // pred_check_branch
      %84 = sbr.rel (%p82) target = $region25
    $region24: #{tpu_custom_call.1} parent=1 // pred_region
      %v85 = vld [vmem:[#allocation2] sm:$0xff]
      %v86 = vld [vmem:[#allocation2 + $0x8] sm:$0xff]
      %v89 = vcombine.high %v85, %v85
      %v90 = vcombine.high %v86, %v86
      %vm93 = vcmask 1043456
      %v94 = vsel %vm93, %v85, 0.0
      %v95 = vsel %vm93, %v89, 0.0
      %v96 = vadd.f32 %v94, %v95
      %v97 = vsel %vm93, %v86, 0.0
      %v98 = vadd.f32 %v96, %v97
      %v99 = vsel %vm93, %v90, 0.0
      %v100 = vadd.f32 %v98, %v99
      %101 = vadd.xlane.f32.xlu0 %v100
      %v102 = vpop.xlane.xlu0 %101
      %v103 = vrot.slane %v102, 4
      %v104 = vadd.f32 %v102, %v103
      %v105 = vrot.slane %v104, 2
      %v106 = vadd.f32 %v104, %v105
      %v107 = vrot.slane %v106, 1
      %v108 = vadd.f32 %v106, %v107
      %s109 = vtos %v108
      %v110 = vld [vmem:[#allocation3] sm:$0xff]
      %v111 = vld [vmem:[#allocation3 + $0x8] sm:$0xff]
      %v114 = vcombine.high %v110, %v110
      %v115 = vcombine.high %v111, %v111
      %v118 = vsel %vm93, %v110, 0.0
      %v119 = vsel %vm93, %v114, 0.0
      %v120 = vadd.f32 %v118, %v119
      %v121 = vsel %vm93, %v111, 0.0
      %v122 = vadd.f32 %v120, %v121
      %v123 = vsel %vm93, %v115, 0.0
      %v124 = vadd.f32 %v122, %v123
      %125 = vadd.xlane.f32.xlu0 %v124
      %v126 = vpop.xlane.xlu0 %125
      %v127 = vrot.slane %v126, 4
      %v128 = vadd.f32 %v126, %v127
      %v129 = vrot.slane %v128, 2
      %v130 = vadd.f32 %v128, %v129
      %v131 = vrot.slane %v130, 1
      %v132 = vadd.f32 %v130, %v131
      %s133 = vtos %v132
      %v134 = vlaneseq
      %v135 = vand.u32 %v134, 127
      %vm136 = vcmp.eq.s32.totalorder %v135, 0
      %vm137 = vcmp.eq.s32.totalorder %v135, 1
      %v138 = vstv %s133
      %v139 = vsel %vm137, %v138, 0.0
      %v140 = vstv %s109
      %v141 = vsel %vm136, %v140, %v139
      %142 = vst [vmem:[#allocation9] sm:$0x1] %v141
    $region25: #{tpu_custom_call.1} parent=1 // pred_fallthru
      _
    // Predicated region
    $region26: #{tpu_custom_call.1} parent=1 // pred_check
      _
    $region27: #{tpu_custom_call.1} parent=1 // pred_check_branch
      %144 = sbr.rel (0) target = $region29
    $region28: #{tpu_custom_call.1} parent=1 // pred_region
      %s146 = ssub.s32 16, 16
      %147 = vsyncadd [#allocation6], %s146
      %s149 = sshll.u32 [#allocation9], 4
      %s150 = int_to_ptr.vmem [resolvable:$true] %s149
      %152 = dma.vmem_to_hbm [thread:$0]  %s150, 16, %s2, [#allocation6]
    $region29: #{tpu_custom_call.1} parent=1 // pred_fallthru
      _
    // Predicated region
    $region30: #{tpu_custom_call.1} parent=1 // pred_check
      _
    $region31: #{tpu_custom_call.1} parent=1 // pred_check_branch
      %154 = sbr.rel (0) target = $region33
    $region32: #{tpu_custom_call.1} parent=1 // pred_region
      %155 = dma.done [#allocation6], 16
    $region33: #{tpu_custom_call.1} parent=1 // pred_fallthru
      _
    %156 = vsyncpa [#allocation5], 1
    %157 = vsyncpa [#allocation8], 1
    %158 = vsyncpa [#allocation6], 1

</llo_original>
